<compile_context>
chip_gen: v6e
topology: v6e:2x2x1
jax: 0.10.0
libtpu: 0.0.40
codegen_flags: <defaults>
</compile_context>

<pallas_src>
import functools

import jax
import jax.numpy as jnp
from jax import lax
from jax.experimental import pallas as pl
from jax.experimental.pallas import tpu as pltpu


def _round_up(a, m):
    return ((a + m - 1) // m) * m


# --------------------------------------------------------------------------
# Kernel 1: fused QKV projection (one MXU pass per token tile, done once).
# --------------------------------------------------------------------------
def _qkv_proj_kernel(x_ref, w_ref, q_ref, k_ref, v_ref, *, scale):
    # x_ref: (blk, C); w_ref: (C, 3H) resident across the grid.
    H = q_ref.shape[-1]
    qkv = jnp.dot(x_ref[...], w_ref[...],
                  preferred_element_type=jnp.float32)         # (blk, 3H) f32
    # Fold the softmax scale into q (cheap O(T*H) work).
    q_ref[...] = (qkv[:, :H] * scale).astype(q_ref.dtype)
    k_ref[...] = qkv[:, H:2 * H].astype(k_ref.dtype)
    v_ref[...] = qkv[:, 2 * H:].astype(v_ref.dtype)


# --------------------------------------------------------------------------
# Kernel 2: flash attention over one query tile; per-batch K/V resident in
# VMEM; triangular (causal) key loop runs inside the kernel.
# --------------------------------------------------------------------------
def _flash_attn_kernel(q_ref, k_ref, v_ref, o_ref, *, exact_div):
    blk, H = q_ref.shape                      # (blk, H): q tile, already scaled
    qi = pl.program_id(1)
    q = q_ref[...]                            # compute dtype (bf16 or f32)

    def load_kv(ki):
        start = pl.multiple_of(ki * blk, blk)
        return k_ref[pl.ds(start, blk), :], v_ref[pl.ds(start, blk), :]

    def scores(k_tile):
        # Contract on H of both operands -> no k transpose (no XLU pass).
        return lax.dot_general(q, k_tile, (((1,), (1,)), ((), ())),
                               preferred_element_type=jnp.float32)  # (blk, blk)

    def online_update(s, v_tile, carry):
        m_prev, l_prev, acc_prev = carry
        m_new = jnp.maximum(m_prev, jnp.max(s, axis=-1, keepdims=True))
        alpha = jnp.exp(m_prev - m_new)
        p = jnp.exp(s - m_new)
        l_new = alpha * l_prev + jnp.sum(p, axis=-1, keepdims=True)
        acc_new = alpha * acc_prev + jnp.dot(
            p.astype(v_tile.dtype), v_tile, preferred_element_type=jnp.float32)
        return m_new, l_new, acc_new

    def interior_step(ki, carry):
        k_tile, v_tile = load_kv(ki)
        return online_update(scores(k_tile), v_tile, carry)

    carry0 = (jnp.full((blk, 1), -jnp.inf, jnp.float32),   # running max
              jnp.zeros((blk, 1), jnp.float32),            # running sum
              jnp.zeros((blk, H), jnp.float32))            # output accumulator

    # Interior (strictly below-diagonal) key tiles: no mask needed at all.
    carry = lax.fori_loop(0, qi, interior_step, carry0)

    # Diagonal tile: the only place the causal mask is materialized.
    k_tile, v_tile = load_kv(qi)
    s = scores(k_tile)
    rel_row = lax.broadcasted_iota(jnp.int32, (blk, blk), 0)
    rel_col = lax.broadcasted_iota(jnp.int32, (blk, blk), 1)
    s = jnp.where(rel_col <= rel_row, s, -jnp.inf)
    m, l, acc = online_update(s, v_tile, carry)

    if exact_div:
        out = acc / l                                     # exact (f32 path)
    else:
        out = acc * pl.reciprocal(l, approx=True)         # EUP slot, ~free
    o_ref[...] = out.astype(o_ref.dtype)


# --------------------------------------------------------------------------
# Wrapper
# --------------------------------------------------------------------------
def fuse_qkv_weights(w_query, w_key, w_value):
    """Build the fused (C, 3H) projection weight once (hoisted out of the
    per-forward-call path)."""
    return jnp.concatenate([w_query, w_key, w_value], axis=1)


@functools.partial(jax.jit, static_argnames=("block", "compute_dtype"))
def head_forward(x, w_qkv, *, block=128, compute_dtype=jnp.bfloat16):
    """x: (B, T, C); w_qkv: (C, 3H) = [Wq | Wk | Wv]. Returns (B, T, H)."""
    B, T, C = x.shape
    H = w_qkv.shape[-1] // 3
    scale = C ** -0.5          # PyTorch module scales by n_embd**-0.5, not H.

    # Tile size: multiple of 8 (sublane); pad T up so the flash path is always
    # taken (no monolithic (T,T) fallback).
    blk = block if T >= block else _round_up(T, 8)
    T_pad = _round_up(T, blk)
    nq = T_pad // blk

    xp = x
    if T_pad != T:
        xp = jnp.pad(x, ((0, 0), (0, T_pad - T), (0, 0)))
    xp = xp.astype(compute_dtype)
    wc = w_qkv.astype(compute_dtype)

    # ---- 1) QKV projection (once per token, hoisted out of the flash loop).
    q, k, v = pl.pallas_call(
        functools.partial(_qkv_proj_kernel, scale=scale),
        out_shape=(jax.ShapeDtypeStruct((B, T_pad, H), compute_dtype),
                   jax.ShapeDtypeStruct((B, T_pad, H), compute_dtype),
                   jax.ShapeDtypeStruct((B, T_pad, H), compute_dtype)),
        grid_spec=pltpu.PrefetchScalarGridSpec(
            num_scalar_prefetch=0,
            grid=(B, nq),
            in_specs=[
                pl.BlockSpec((None, blk, C), lambda b, i: (b, i, 0)),
                pl.BlockSpec((C, 3 * H), lambda b, i: (0, 0)),   # resident
            ],
            out_specs=[
                pl.BlockSpec((None, blk, H), lambda b, i: (b, i, 0)),
                pl.BlockSpec((None, blk, H), lambda b, i: (b, i, 0)),
                pl.BlockSpec((None, blk, H), lambda b, i: (b, i, 0)),
            ],
        ),
        compiler_params=pltpu.CompilerParams(
            dimension_semantics=("parallel", "parallel")),
    )(xp, wc)

    # ---- 2) Flash attention. K/V blocks are per-batch resident (index (b,0,0)
    # never changes within a batch => DMA'd once per batch); the causal key
    # loop runs inside the kernel, so no grid steps / DMA for masked tiles.
    out = pl.pallas_call(
        functools.partial(_flash_attn_kernel,
                          exact_div=(compute_dtype == jnp.float32)),
        out_shape=jax.ShapeDtypeStruct((B, T_pad, H), x.dtype),
        grid_spec=pltpu.PrefetchScalarGridSpec(
            num_scalar_prefetch=0,
            grid=(B, nq),
            in_specs=[
                pl.BlockSpec((None, blk, H), lambda b, qi: (b, qi, 0)),
                pl.BlockSpec((None, T_pad, H), lambda b, qi: (b, 0, 0)),
                pl.BlockSpec((None, T_pad, H), lambda b, qi: (b, 0, 0)),
            ],
            out_specs=pl.BlockSpec((None, blk, H), lambda b, qi: (b, qi, 0)),
        ),
        compiler_params=pltpu.CompilerParams(
            dimension_semantics=("parallel", "parallel")),
    )(q, k, v)

    if T_pad != T:
        out = out[:, :T, :]
    return out


def reference_forward(x, w_key, w_query, w_value):
    """Pure-JAX reference mirroring the PyTorch forward (dropout in eval)."""
    B, T, C = x.shape
    k = x @ w_key
    q = x @ w_query
    v = x @ w_value
    wei = (q @ jnp.swapaxes(k, -2, -1)) * (C ** -0.5)
    tril = jnp.tril(jnp.ones((T, T), dtype=bool))
    wei = jnp.where(tril, wei, -jnp.inf)
    wei = jax.nn.softmax(wei, axis=-1)
    return wei @ v


if __name__ == "__main__":
    def make_inputs(key, B, T, C, H):
        kx, kk, kq, kv = jax.random.split(key, 4)
        bound = 1.0 / (C ** 0.5)
        x = jax.random.normal(kx, (B, T, C), jnp.float32)
        w_key = jax.random.uniform(kk, (C, H), jnp.float32, -bound, bound)
        w_query = jax.random.uniform(kq, (C, H), jnp.float32, -bound, bound)
        w_value = jax.random.uniform(kv, (C, H), jnp.float32, -bound, bound)
        return x, w_key, w_query, w_value

    root = jax.random.PRNGKey(0)
    key1, key2 = jax.random.split(root)

    # --- Test 1: module-sized toy shapes (single q-tile, T < block) ---
    B, T, C, H = 2, 8, 32, 16          # batch, block_size/seq, n_embd, head_size
    x, wk, wq, wv = make_inputs(key1, B, T, C, H)
    w_qkv = fuse_qkv_weights(wq, wk, wv)
    ref = reference_forward(x, wk, wq, wv)

    out_bf16 = jax.block_until_ready(head_forward(x, w_qkv))
    assert out_bf16.shape == (B, T, H)
    assert jnp.allclose(out_bf16, ref, atol=5e-2, rtol=5e-2), "bf16 mismatch"

    out_f32 = jax.block_until_ready(
        head_forward(x, w_qkv, compute_dtype=jnp.float32))
    assert jnp.allclose(out_f32, ref, atol=1e-2, rtol=1e-2), "f32 mismatch"

    # --- Test 2: multi-tile flash path with padding (T not a multiple of 128),
    # exercising the in-kernel triangular key loop + diagonal-only masking ---
    B2, T2, C2, H2 = 2, 200, 64, 32
    x2, wk2, wq2, wv2 = make_inputs(key2, B2, T2, C2, H2)
    w_qkv2 = fuse_qkv_weights(wq2, wk2, wv2)
    ref2 = reference_forward(x2, wk2, wq2, wv2)

    out2_f32 = jax.block_until_ready(
        head_forward(x2, w_qkv2, block=128, compute_dtype=jnp.float32))
    assert out2_f32.shape == (B2, T2, H2)
    assert jnp.allclose(out2_f32, ref2, atol=1e-2, rtol=1e-2), "tiled f32 mismatch"

    out2_bf16 = jax.block_until_ready(head_forward(x2, w_qkv2, block=128))
    assert jnp.allclose(out2_bf16, ref2, atol=7e-2, rtol=7e-2), "tiled bf16 mismatch"

    print("KERNEL_OK")
</pallas_src>

<mosaic_0001>
module attributes {stable_mosaic.version = 11 : i64} {
  func.func @_qkv_proj_kernel(%arg0: i32, %arg1: i32, %arg2: memref<1x8x32xbf16, #tpu.memory_space<vmem>>, %arg3: memref<32x48xbf16, #tpu.memory_space<vmem>>, %arg4: memref<1x8x16xbf16, #tpu.memory_space<vmem>>, %arg5: memref<1x8x16xbf16, #tpu.memory_space<vmem>>, %arg6: memref<1x8x16xbf16, #tpu.memory_space<vmem>>) attributes {dimension_semantics = [#tpu.dimension_semantics<parallel>, #tpu.dimension_semantics<parallel>], iteration_bounds = array<i64: 2, 1>, scalar_prefetch = 0 : i64, scratch_operands = 0 : i64, tpu.core_type = #tpu.core_type<tc>, window_params = [{transform_indices = @transform_0, window_bounds = array<i64: 1, 8, 32>}, {pipeline_mode = #tpu.pipeline_mode<synchronous>, transform_indices = @transform_1, window_bounds = array<i64: 32, 48>}, {transform_indices = @transform_2, window_bounds = array<i64: 1, 8, 16>}, {transform_indices = @transform_3, window_bounds = array<i64: 1, 8, 16>}, {transform_indices = @transform_4, window_bounds = array<i64: 1, 8, 16>}]} {
    %c0 = arith.constant 0 : index
    %c0_0 = arith.constant 0 : index
    %c0_1 = arith.constant 0 : index
    %0 = vector.load %arg2[%c0, %c0_0, %c0_1] : memref<1x8x32xbf16, #tpu.memory_space<vmem>>, vector<1x8x32xbf16>
    %1 = vector.shape_cast %0 : vector<1x8x32xbf16> to vector<8x32xbf16>
    %c0_2 = arith.constant 0 : index
    %c0_3 = arith.constant 0 : index
    %2 = vector.load %arg3[%c0_2, %c0_3] : memref<32x48xbf16, #tpu.memory_space<vmem>>, vector<32x48xbf16>
    %cst = arith.constant dense<0.000000e+00> : vector<8x48xf32>
    %3 = tpu.matmul %1, %2, %cst {dimension_numbers = #tpu.dot_dimension_numbers<[1], [0], [0], [1], [0, 0, 1, 1], [], []>} : vector<8x32xbf16>, vector<32x48xbf16>, vector<8x48xf32> -> vector<8x48xf32>
    %4 = vector.extract_strided_slice %3 {offsets = [0, 0], sizes = [8, 16], strides = [1, 1]} : vector<8x48xf32> to vector<8x16xf32>
    %cst_4 = arith.constant 0.176776692 : f32
    %5 = vector.broadcast %cst_4 : f32 to vector<8x16xf32>
    %6 = arith.mulf %4, %5 : vector<8x16xf32>
    %7 = arith.truncf %6 : vector<8x16xf32> to vector<8x16xbf16>
    %c0_5 = arith.constant 0 : index
    %c0_6 = arith.constant 0 : index
    %c0_7 = arith.constant 0 : index
    %8 = vector.load %arg4[%c0_5, %c0_6, %c0_7] : memref<1x8x16xbf16, #tpu.memory_space<vmem>>, vector<1x8x16xbf16>
    %9 = vector.shape_cast %8 : vector<1x8x16xbf16> to vector<8x16xbf16>
    %10 = vector.shape_cast %7 : vector<8x16xbf16> to vector<1x8x16xbf16>
    tpu.vector_store %arg4[%c0_5, %c0_6, %c0_7], %10 {strides = array<i32>} : memref<1x8x16xbf16, #tpu.memory_space<vmem>>, vector<1x8x16xbf16>,
    %11 = vector.extract_strided_slice %3 {offsets = [0, 16], sizes = [8, 16], strides = [1, 1]} : vector<8x48xf32> to vector<8x16xf32>
    %12 = arith.truncf %11 : vector<8x16xf32> to vector<8x16xbf16>
    %c0_8 = arith.constant 0 : index
    %c0_9 = arith.constant 0 : index
    %c0_10 = arith.constant 0 : index
    %13 = vector.load %arg5[%c0_8, %c0_9, %c0_10] : memref<1x8x16xbf16, #tpu.memory_space<vmem>>, vector<1x8x16xbf16>
    %14 = vector.shape_cast %13 : vector<1x8x16xbf16> to vector<8x16xbf16>
    %15 = vector.shape_cast %12 : vector<8x16xbf16> to vector<1x8x16xbf16>
    tpu.vector_store %arg5[%c0_8, %c0_9, %c0_10], %15 {strides = array<i32>} : memref<1x8x16xbf16, #tpu.memory_space<vmem>>, vector<1x8x16xbf16>,
    %16 = vector.extract_strided_slice %3 {offsets = [0, 32], sizes = [8, 16], strides = [1, 1]} : vector<8x48xf32> to vector<8x16xf32>
    %17 = arith.truncf %16 : vector<8x16xf32> to vector<8x16xbf16>
    %c0_11 = arith.constant 0 : index
    %c0_12 = arith.constant 0 : index
    %c0_13 = arith.constant 0 : index
    %18 = vector.load %arg6[%c0_11, %c0_12, %c0_13] : memref<1x8x16xbf16, #tpu.memory_space<vmem>>, vector<1x8x16xbf16>
    %19 = vector.shape_cast %18 : vector<1x8x16xbf16> to vector<8x16xbf16>
    %20 = vector.shape_cast %17 : vector<8x16xbf16> to vector<1x8x16xbf16>
    tpu.vector_store %arg6[%c0_11, %c0_12, %c0_13], %20 {strides = array<i32>} : memref<1x8x16xbf16, #tpu.memory_space<vmem>>, vector<1x8x16xbf16>,
    return
  }
  func.func @transform_0(%arg0: i32, %arg1: i32) -> (i32, i32, i32) {
    %c0_i32 = arith.constant 0 : i32
    %c0_i32_0 = arith.constant 0 : i32
    return %arg0, %arg1, %c0_i32 : i32, i32, i32
  }
  func.func @transform_1(%arg0: i32, %arg1: i32) -> (i32, i32) {
    %c0_i32 = arith.constant 0 : i32
    %c0_i32_0 = arith.constant 0 : i32
    %c0_i32_1 = arith.constant 0 : i32
    return %c0_i32, %c0_i32_0 : i32, i32
  }
  func.func @transform_2(%arg0: i32, %arg1: i32) -> (i32, i32, i32) {
    %c0_i32 = arith.constant 0 : i32
    %c0_i32_0 = arith.constant 0 : i32
    return %arg0, %arg1, %c0_i32 : i32, i32, i32
  }
  func.func @transform_3(%arg0: i32, %arg1: i32) -> (i32, i32, i32) {
    %c0_i32 = arith.constant 0 : i32
    %c0_i32_0 = arith.constant 0 : i32
    return %arg0, %arg1, %c0_i32 : i32, i32, i32
  }
  func.func @transform_4(%arg0: i32, %arg1: i32) -> (i32, i32, i32) {
    %c0_i32 = arith.constant 0 : i32
    %c0_i32_0 = arith.constant 0 : i32
    return %arg0, %arg1, %c0_i32 : i32, i32, i32
  }
}

module attributes {stable_mosaic.version = 11 : i64} {
  func.func @_flash_attn_kernel(%arg0: i32, %arg1: i32, %arg2: memref<1x8x16xbf16, #tpu.memory_space<vmem>>, %arg3: memref<1x8x16xbf16, #tpu.memory_space<vmem>>, %arg4: memref<1x8x16xbf16, #tpu.memory_space<vmem>>, %arg5: memref<1x8x16xf32, #tpu.memory_space<vmem>>) attributes {dimension_semantics = [#tpu.dimension_semantics<parallel>, #tpu.dimension_semantics<parallel>], iteration_bounds = array<i64: 2, 1>, scalar_prefetch = 0 : i64, scratch_operands = 0 : i64, tpu.core_type = #tpu.core_type<tc>, window_params = [{transform_indices = @transform_0, window_bounds = array<i64: 1, 8, 16>}, {transform_indices = @transform_1, window_bounds = array<i64: 1, 8, 16>}, {transform_indices = @transform_2, window_bounds = array<i64: 1, 8, 16>}, {transform_indices = @transform_3, window_bounds = array<i64: 1, 8, 16>}]} {
    %c0 = arith.constant 0 : index
    %c0_0 = arith.constant 0 : index
    %c0_1 = arith.constant 0 : index
    %0 = vector.load %arg2[%c0, %c0_0, %c0_1] : memref<1x8x16xbf16, #tpu.memory_space<vmem>>, vector<1x8x16xbf16>
    %1 = vector.shape_cast %0 : vector<1x8x16xbf16> to vector<8x16xbf16>
    %cst = arith.constant 0xFF800000 : f32
    %2 = vector.broadcast %cst : f32 to vector<8x1xf32>
    %cst_2 = arith.constant 0.000000e+00 : f32
    %3 = vector.broadcast %cst_2 : f32 to vector<8x1xf32>
    %cst_3 = arith.constant 0.000000e+00 : f32
    %4 = vector.broadcast %cst_3 : f32 to vector<8x16xf32>
    %c0_i32 = arith.constant 0 : i32
    %5 = arith.subi %arg1, %c0_i32 : i32
    %6 = arith.addi %c0_i32, %5 : i32
    %c1_i32 = arith.constant 1 : i32
    %7:3 = scf.for %arg6 = %c0_i32 to %6 step %c1_i32 iter_args(%arg7 = %2, %arg8 = %3, %arg9 = %4) -> (vector<8x1xf32>, vector<8x1xf32>, vector<8x16xf32>)  : i32 {
      %c8_i32_16 = arith.constant 8 : i32
      %45 = arith.muli %arg6, %c8_i32_16 : i32
      %46 = tpu.assume_multiple %45, 8 : i32
      %c0_17 = arith.constant 0 : index
      %47 = arith.index_cast %46 : i32 to index
      %c0_18 = arith.constant 0 : index
      %48 = vector.load %arg3[%c0_17, %47, %c0_18] : memref<1x8x16xbf16, #tpu.memory_space<vmem>>, vector<1x8x16xbf16>
      %49 = vector.shape_cast %48 : vector<1x8x16xbf16> to vector<8x16xbf16>
      %c0_19 = arith.constant 0 : index
      %50 = arith.index_cast %46 : i32 to index
      %c0_20 = arith.constant 0 : index
      %51 = vector.load %arg4[%c0_19, %50, %c0_20] : memref<1x8x16xbf16, #tpu.memory_space<vmem>>, vector<1x8x16xbf16>
      %52 = vector.shape_cast %51 : vector<1x8x16xbf16> to vector<8x16xbf16>
      %cst_21 = arith.constant dense<0.000000e+00> : vector<8x8xf32>
      %53 = tpu.matmul %1, %49, %cst_21 {dimension_numbers = #tpu.dot_dimension_numbers<[1], [1], [0], [0], [0, 0, 1, 0], [], []>} : vector<8x16xbf16>, vector<8x16xbf16>, vector<8x8xf32> -> vector<8x8xf32>
      %cst_22 = arith.constant dense<0xFF800000> : vector<8xf32>
      %54 = vector.multi_reduction <maximumf>, %53, %cst_22 [1] : vector<8x8xf32> to vector<8xf32>
      %55 = vector.shape_cast %54 : vector<8xf32> to vector<8x1xf32>
      %56 = arith.maximumf %arg7, %55 : vector<8x1xf32>
      %57 = arith.subf %arg7, %56 : vector<8x1xf32>
      %58 = math.exp %57 : vector<8x1xf32>
      %59 = vector.broadcast %56 : vector<8x1xf32> to vector<8x8xf32>
      %60 = arith.subf %53, %59 : vector<8x8xf32>
      %61 = math.exp %60 : vector<8x8xf32>
      %62 = arith.mulf %58, %arg8 : vector<8x1xf32>
      %cst_23 = arith.constant dense<0.000000e+00> : vector<8xf32>
      %63 = vector.multi_reduction <add>, %61, %cst_23 [1] : vector<8x8xf32> to vector<8xf32>
      %64 = vector.shape_cast %63 : vector<8xf32> to vector<8x1xf32>
      %65 = arith.addf %62, %64 : vector<8x1xf32>
      %66 = vector.broadcast %58 : vector<8x1xf32> to vector<8x16xf32>
      %67 = arith.mulf %66, %arg9 : vector<8x16xf32>
      %68 = arith.truncf %61 : vector<8x8xf32> to vector<8x8xbf16>
      %cst_24 = arith.constant dense<0.000000e+00> : vector<8x16xf32>
      %69 = tpu.matmul %68, %52, %cst_24 {dimension_numbers = #tpu.dot_dimension_numbers<[1], [0], [0], [1], [0, 0, 1, 1], [], []>} : vector<8x8xbf16>, vector<8x16xbf16>, vector<8x16xf32> -> vector<8x16xf32>
      %70 = arith.addf %67, %69 : vector<8x16xf32>
      scf.yield %56, %65, %70 : vector<8x1xf32>, vector<8x1xf32>, vector<8x16xf32>
    }
    %c8_i32 = arith.constant 8 : i32
    %8 = arith.muli %arg1, %c8_i32 : i32
    %9 = tpu.assume_multiple %8, 8 : i32
    %c0_4 = arith.constant 0 : index
    %10 = arith.index_cast %9 : i32 to index
    %c0_5 = arith.constant 0 : index
    %11 = vector.load %arg3[%c0_4, %10, %c0_5] : memref<1x8x16xbf16, #tpu.memory_space<vmem>>, vector<1x8x16xbf16>
    %12 = vector.shape_cast %11 : vector<1x8x16xbf16> to vector<8x16xbf16>
    %c0_6 = arith.constant 0 : index
    %13 = arith.index_cast %9 : i32 to index
    %c0_7 = arith.constant 0 : index
    %14 = vector.load %arg4[%c0_6, %13, %c0_7] : memref<1x8x16xbf16, #tpu.memory_space<vmem>>, vector<1x8x16xbf16>
    %15 = vector.shape_cast %14 : vector<1x8x16xbf16> to vector<8x16xbf16>
    %cst_8 = arith.constant dense<0.000000e+00> : vector<8x8xf32>
    %16 = tpu.matmul %1, %12, %cst_8 {dimension_numbers = #tpu.dot_dimension_numbers<[1], [1], [0], [0], [0, 0, 1, 0], [], []>} : vector<8x16xbf16>, vector<8x16xbf16>, vector<8x8xf32> -> vector<8x8xf32>
    %17 = tpu.iota {dimensions = array<i32: 0>} : vector<8x8xi32>
    %18 = tpu.iota {dimensions = array<i32: 1>} : vector<8x8xi32>
    %19 = arith.cmpi sle, %18, %17 : vector<8x8xi32>
    %cst_9 = arith.constant 0xFF800000 : f32
    %20 = vector.broadcast %cst_9 : f32 to vector<8x8xf32>
    %21 = arith.select %19, %16, %20 : vector<8x8xi1>, vector<8x8xf32>
    %cst_10 = arith.constant dense<0xFF800000> : vector<8xf32>
    %22 = vector.multi_reduction <maximumf>, %21, %cst_10 [1] : vector<8x8xf32> to vector<8xf32>
    %23 = vector.shape_cast %22 : vector<8xf32> to vector<8x1xf32>
    %24 = arith.maximumf %7#0, %23 : vector<8x1xf32>
    %25 = arith.subf %7#0, %24 : vector<8x1xf32>
    %26 = math.exp %25 : vector<8x1xf32>
    %27 = vector.broadcast %24 : vector<8x1xf32> to vector<8x8xf32>
    %28 = arith.subf %21, %27 : vector<8x8xf32>
    %29 = math.exp %28 : vector<8x8xf32>
    %30 = arith.mulf %26, %7#1 : vector<8x1xf32>
    %cst_11 = arith.constant dense<0.000000e+00> : vector<8xf32>
    %31 = vector.multi_reduction <add>, %29, %cst_11 [1] : vector<8x8xf32> to vector<8xf32>
    %32 = vector.shape_cast %31 : vector<8xf32> to vector<8x1xf32>
    %33 = arith.addf %30, %32 : vector<8x1xf32>
    %34 = vector.broadcast %26 : vector<8x1xf32> to vector<8x16xf32>
    %35 = arith.mulf %34, %7#2 : vector<8x16xf32>
    %36 = arith.truncf %29 : vector<8x8xf32> to vector<8x8xbf16>
    %cst_12 = arith.constant dense<0.000000e+00> : vector<8x16xf32>
    %37 = tpu.matmul %36, %15, %cst_12 {dimension_numbers = #tpu.dot_dimension_numbers<[1], [0], [0], [1], [0, 0, 1, 1], [], []>} : vector<8x8xbf16>, vector<8x16xbf16>, vector<8x16xf32> -> vector<8x16xf32>
    %38 = arith.addf %35, %37 : vector<8x16xf32>
    %39 = tpu.reciprocal %33 {approx = true} : vector<8x1xf32> -> vector<8x1xf32>
    %40 = vector.broadcast %39 : vector<8x1xf32> to vector<8x16xf32>
    %41 = arith.mulf %38, %40 : vector<8x16xf32>
    %c0_13 = arith.constant 0 : index
    %c0_14 = arith.constant 0 : index
    %c0_15 = arith.constant 0 : index
    %42 = vector.load %arg5[%c0_13, %c0_14, %c0_15] : memref<1x8x16xf32, #tpu.memory_space<vmem>>, vector<1x8x16xf32>
    %43 = vector.shape_cast %42 : vector<1x8x16xf32> to vector<8x16xf32>
    %44 = vector.shape_cast %41 : vector<8x16xf32> to vector<1x8x16xf32>
    tpu.vector_store %arg5[%c0_13, %c0_14, %c0_15], %44 {strides = array<i32>} : memref<1x8x16xf32, #tpu.memory_space<vmem>>, vector<1x8x16xf32>,
    return
  }
  func.func @transform_0(%arg0: i32, %arg1: i32) -> (i32, i32, i32) {
    %c0_i32 = arith.constant 0 : i32
    %c0_i32_0 = arith.constant 0 : i32
    return %arg0, %arg1, %c0_i32 : i32, i32, i32
  }
  func.func @transform_1(%arg0: i32, %arg1: i32) -> (i32, i32, i32) {
    %c0_i32 = arith.constant 0 : i32
    %c0_i32_0 = arith.constant 0 : i32
    %c0_i32_1 = arith.constant 0 : i32
    return %arg0, %c0_i32, %c0_i32_0 : i32, i32, i32
  }
  func.func @transform_2(%arg0: i32, %arg1: i32) -> (i32, i32, i32) {
    %c0_i32 = arith.constant 0 : i32
    %c0_i32_0 = arith.constant 0 : i32
    %c0_i32_1 = arith.constant 0 : i32
    return %arg0, %c0_i32, %c0_i32_0 : i32, i32, i32
  }
  func.func @transform_3(%arg0: i32, %arg1: i32) -> (i32, i32, i32) {
    %c0_i32 = arith.constant 0 : i32
    %c0_i32_0 = arith.constant 0 : i32
    return %arg0, %arg1, %c0_i32 : i32, i32, i32
  }
}

</mosaic_0001>

<llo_original>
// kernel: head_forward.3
$region0: #{head_forward.3}
  #allocation0 [shape = 'u32[]', space=smem, size = 0x4, offset = 0x4, fixed_abs, tag = 'smem constant byte address 0x4 - core index']
  #allocation1 [shape = 'u32[144,128]{1,0:T(1,128)}', space=vmem, size = 0x12000, scoped, tag = 'internal scratch']
  %s0 = inlined_call_operand.vmem [shape: bf16[2,8,16], index: 0, kind: input, shape index: {}]
  %s1 = inlined_call_operand.vmem [shape: bf16[2,8,16], index: 1, kind: input, shape index: {}]
  %s2 = inlined_call_operand.vmem [shape: bf16[2,8,16], index: 2, kind: input, shape index: {}]
  %s3 = inlined_call_operand.hbm [shape: f32[2,8,16], index: 3, kind: output, shape index: {}]
  %s4 = sld [smem:[#allocation0]]
  $region52: #{head_forward.3} parent=0
    _
  %s6 = ssub.s32 1, %s4
  %s7 = scalar_select 0, %s6, %s4
  $region1: #{head_forward.3} parent=0
    #allocation2 [shape = 'u8[8192]{0}', space=vmem, size = 0x2000, scoped, tag = 'output window, operand 0']
    #allocation3 [shape = 's32[2]{0}', space=sflag, size = 0x8, scoped, tag = 'scoped memory for head_forward.3']
    %8 = vsyncpa [#allocation3], 0
    %s9 = scalar_lea.sflag [#allocation3], 1
    %10 = vsyncpa %s9, 0
    loop: start=0, step=1, limit=4
    $region2: #{head_forward.3} parent=1 // loop_pre_header
      _
    $region3: #{head_forward.3} parent=1 // loop_header
      %s12 = sphi 0, %s16
      %p13 = scmp.ge.s32.totalorder %s12, 4
      %s19 = sphi 0, %s31
      %s20 = sphi 0, %s27
      %s21 = sphi 0, %s19
      %s22 = sphi 0, %s20
      %s23 = sphi 0, %s21
      %s24 = sphi 0, %s22
      %s36 = sphi 0, %s38
      %s39 = sphi 0, %s36
      %s40 = sphi 0, %s39
      %s56 = sphi 0, %s40
      %s62 = sphi 0, %s64
      %s65 = sphi 0, %s62
      %s66 = sphi 0, %s65
      %s82 = sphi 0, %s66
      %s88 = sphi 0, %s90
      %s91 = sphi 0, %s88
      %s92 = sphi 0, %s91
      %s108 = sphi 0, %s92
      %s116 = sphi 0, %s118
      %s119 = sphi 0, %s116
      %s120 = sphi 0, %s119
      %s136 = sphi 0, %s120
    $region4: #{head_forward.3} parent=1 // loop_header_branch
      %15 = sbr.rel (%p13) target = $region8
    $region5: #{head_forward.3} parent=1 // loop_body
      %s17 = ssub.s32 %s12, 1
      %s18 = ssub.s32 %s12, 2
      %s25 = sadd.s32 1, %s20
      %p26 = scmp.ge.s32.totalorder %s25, 1
      %s27 = scalar_select %p26, 0, %s25
      %s28 = sadd.s32 1, %s19
      %s29 = scalar_select %p26, %s28, %s19
      %p30 = scmp.ge.s32.totalorder %s29, 2
      %s31 = scalar_select %p30, 0, %s29
      %s32 = ssub.s32 %s19, %s31
      %s33 = ssub.s32 %s20, %s27
      %s34 = sor.u32 %s32, %s33
      %p35 = scmp.eq.s32.totalorder %s34, 0
      %s37 = sadd.s32 %s36, 1
      %s38 = scalar_select %p35, %s36, %s37
      %p41 = pneg %p35
      %p42 = scmp.eq.s32.totalorder %s12, 1
      %p43 = por %p41, %p42
      %p44 = scmp.ne.s32.totalorder %s36, %s39
      %p45 = scmp.eq.s32.totalorder %s12, 0
      %p46 = por %p44, %p45
      %p47 = scmp.ne.s32.totalorder %s36, %s39
      %p48 = scmp.eq.s32.totalorder %s17, 1
      %p49 = por %p47, %p48
      %p50 = scmp.ne.s32.totalorder %s39, %s40
      %p51 = scmp.eq.s32.totalorder %s17, 0
      %p52 = por %p50, %p51
      %p53 = scmp.ne.s32.totalorder %s39, %s40
      %p54 = scmp.eq.s32.totalorder %s18, 1
      %p55 = por %p53, %p54
      %p57 = scmp.ne.s32.totalorder %s40, %s56
      %p58 = scmp.eq.s32.totalorder %s18, 0
      %p59 = por %p57, %p58
      %s60 = ssub.s32 %s19, %s31
      %p61 = scmp.eq.s32.totalorder %s60, 0
      %s63 = sadd.s32 %s62, 1
      %s64 = scalar_select %p61, %s62, %s63
      %p67 = pneg %p61
      %p68 = scmp.eq.s32.totalorder %s12, 1
      %p69 = por %p67, %p68
      %p70 = scmp.ne.s32.totalorder %s62, %s65
      %p71 = scmp.eq.s32.totalorder %s12, 0
      %p72 = por %p70, %p71
      %p73 = scmp.ne.s32.totalorder %s62, %s65
      %p74 = scmp.eq.s32.totalorder %s17, 1
      %p75 = por %p73, %p74
      %p76 = scmp.ne.s32.totalorder %s65, %s66
      %p77 = scmp.eq.s32.totalorder %s17, 0
      %p78 = por %p76, %p77
      %p79 = scmp.ne.s32.totalorder %s65, %s66
      %p80 = scmp.eq.s32.totalorder %s18, 1
      %p81 = por %p79, %p80
      %p83 = scmp.ne.s32.totalorder %s66, %s82
      %p84 = scmp.eq.s32.totalorder %s18, 0
      %p85 = por %p83, %p84
      %s86 = ssub.s32 %s19, %s31
      %p87 = scmp.eq.s32.totalorder %s86, 0
      %s89 = sadd.s32 %s88, 1
      %s90 = scalar_select %p87, %s88, %s89
      %p93 = pneg %p87
      %p94 = scmp.eq.s32.totalorder %s12, 1
      %p95 = por %p93, %p94
      %p96 = scmp.ne.s32.totalorder %s88, %s91
      %p97 = scmp.eq.s32.totalorder %s12, 0
      %p98 = por %p96, %p97
      %p99 = scmp.ne.s32.totalorder %s88, %s91
      %p100 = scmp.eq.s32.totalorder %s17, 1
      %p101 = por %p99, %p100
      %p102 = scmp.ne.s32.totalorder %s91, %s92
      %p103 = scmp.eq.s32.totalorder %s17, 0
      %p104 = por %p102, %p103
      %p105 = scmp.ne.s32.totalorder %s91, %s92
      %p106 = scmp.eq.s32.totalorder %s18, 1
      %p107 = por %p105, %p106
      %p109 = scmp.ne.s32.totalorder %s92, %s108
      %p110 = scmp.eq.s32.totalorder %s18, 0
      %p111 = por %p109, %p110
      %s112 = ssub.s32 %s19, %s31
      %s113 = ssub.s32 %s20, %s27
      %s114 = sor.u32 %s112, %s113
      %p115 = scmp.eq.s32.totalorder %s114, 0
      %s117 = sadd.s32 %s116, 1
      %s118 = scalar_select %p115, %s116, %s117
      %p121 = pneg %p115
      %p122 = scmp.eq.s32.totalorder %s12, 1
      %p123 = por %p121, %p122
      %p124 = scmp.ne.s32.totalorder %s116, %s119
      %p125 = scmp.eq.s32.totalorder %s12, 0
      %p126 = por %p124, %p125
      %p127 = scmp.ne.s32.totalorder %s116, %s119
      %p128 = scmp.eq.s32.totalorder %s17, 1
      %p129 = por %p127, %p128
      %p130 = scmp.ne.s32.totalorder %s119, %s120
      %p131 = scmp.eq.s32.totalorder %s17, 0
      %p132 = por %p130, %p131
      %p133 = scmp.ne.s32.totalorder %s119, %s120
      %p134 = scmp.eq.s32.totalorder %s18, 1
      %p135 = por %p133, %p134
      %p137 = scmp.ne.s32.totalorder %s120, %s136
      %p138 = scmp.eq.s32.totalorder %s18, 0
      %p139 = por %p137, %p138
      %p140 = scmp.le.s32.totalorder 1, %s12
      %p141 = scmp.lt.s32.totalorder %s12, 3
      %p142 = pnand %p140, %p141
      %p143 = pneg %p142
      // Predicated region
      $region9: #{head_forward.3} parent=5 // pred_check
        _
      $region10: #{head_forward.3} parent=5 // pred_check_branch
        %145 = sbr.rel (%p142) target = $region12
      $region11: #{head_forward.3} parent=5 // pred_region
        %s146 = ssub.s32 %s12, 1
      $region12: #{head_forward.3} parent=5 // pred_fallthru
        _
      %p147 = scmp.lt.s32.totalorder %s12, 2
      // Predicated region
      $region13: #{head_forward.3} parent=5 // pred_check
        %p148 = pneg %p147
      $region14: #{head_forward.3} parent=5 // pred_check_branch
        %150 = sbr.rel (%p148) target = $region16
      $region15: #{head_forward.3} parent=5 // pred_region
        // Predicated region
        $region17: #{head_forward.3} parent=15 // pred_check
          %p151 = pneg %p46
        $region18: #{head_forward.3} parent=15 // pred_check_branch
          %153 = sbr.rel (%p151) target = $region20
        $region19: #{head_forward.3} parent=15 // pred_region
          %p154 = scmp.lt.s32.totalorder %s19, 1
          %s155 = scalar_select %p154, %s19, 1
          %p156 = scmp.lt.s32.totalorder %s20, 0
          %s157 = scalar_select %p156, %s20, 0
          %s158 = sadd.s32 %s157, %s155
          %s159 = smul.addr %s158, 4
          %s160 = scalar_lea.vmem %s0, %s159
        $region20: #{head_forward.3} parent=15 // pred_fallthru
          _
        // Predicated region
        $region21: #{head_forward.3} parent=15 // pred_check
          %p161 = pneg %p72
        $region22: #{head_forward.3} parent=15 // pred_check_branch
          %163 = sbr.rel (%p161) target = $region24
        $region23: #{head_forward.3} parent=15 // pred_region
          %p164 = scmp.lt.s32.totalorder %s19, 1
          %s165 = scalar_select %p164, %s19, 1
          %s166 = smul.addr %s165, 4
          %s167 = scalar_lea.vmem %s1, %s166
        $region24: #{head_forward.3} parent=15 // pred_fallthru
          _
        // Predicated region
        $region25: #{head_forward.3} parent=15 // pred_check
          %p168 = pneg %p98
        $region26: #{head_forward.3} parent=15 // pred_check_branch
          %170 = sbr.rel (%p168) target = $region28
        $region27: #{head_forward.3} parent=15 // pred_region
          %p171 = scmp.lt.s32.totalorder %s19, 1
          %s172 = scalar_select %p171, %s19, 1
          %s173 = smul.addr %s172, 4
          %s174 = scalar_lea.vmem %s2, %s173
        $region28: #{head_forward.3} parent=15 // pred_fallthru
          _
      $region16: #{head_forward.3} parent=5 // pred_fallthru
        _
      %p175 = scmp.le.s32.totalorder 1, %s12
      %p176 = scmp.lt.s32.totalorder %s12, 3
      %p177 = pnand %p175, %p176
      %p178 = pneg %p177
      // Predicated region
      $region29: #{head_forward.3} parent=5 // pred_check
        _
      $region30: #{head_forward.3} parent=5 // pred_check_branch
        %180 = sbr.rel (%p177) target = $region32
      $region31: #{head_forward.3} parent=5 // pred_region
        %s181 = ssub.s32 %s12, 1
        %p182 = scmp.lt.s32.totalorder %s21, 1
        %s183 = scalar_select %p182, %s21, 1
        %p184 = scmp.lt.s32.totalorder %s22, 0
        %s185 = scalar_select %p184, %s22, 0
        %s186 = sadd.s32 %s185, %s183
        %s187 = smul.addr %s186, 4
        %s188 = scalar_lea.vmem %s0, %s187
        %p189 = pneg %p52
        %p190 = pneg %p49
        %p191 = scmp.lt.s32.totalorder %s21, 1
        %s192 = scalar_select %p191, %s21, 1
        %s193 = smul.addr %s192, 4
        %s194 = scalar_lea.vmem %s1, %s193
        %p195 = pneg %p78
        %p196 = pneg %p75
        %p197 = scmp.lt.s32.totalorder %s21, 1
        %s198 = scalar_select %p197, %s21, 1
        %s199 = smul.addr %s198, 4
        %s200 = scalar_lea.vmem %s2, %s199
        %p201 = pneg %p104
        %p202 = pneg %p101
        %p203 = pneg %p132
        %p204 = pneg %p129
        %s205 = sand.u32 %s119, 1
        %s206 = scalar_lea.sflag [#allocation3], %s205
        %s207 = sand.u32 %s119, 1
        %s208 = smul.addr %s207, 8
        %s209 = scalar_lea.vmem [#allocation2], %s208
        %p210 = scmp.lt.s32.totalorder %s21, 1
        %s211 = scalar_select %p210, %s21, 1
        %p212 = scmp.lt.s32.totalorder %s22, 0
        %s213 = scalar_select %p212, %s22, 0
        %s214 = sadd.s32 %s213, %s211
        %s215 = smul.addr %s214, 4
        %s216 = scalar_lea.vmem %s0, %s215
        %p217 = scmp.lt.s32.totalorder %s21, 1
        %s218 = scalar_select %p217, %s21, 1
        %s219 = smul.addr %s218, 4
        %s220 = scalar_lea.vmem %s1, %s219
        %p221 = scmp.lt.s32.totalorder %s21, 1
        %s222 = scalar_select %p221, %s21, 1
        %s223 = smul.addr %s222, 4
        %s224 = scalar_lea.vmem %s2, %s223
        %v226 = vld [vmem:[%s216] sm:$0xf]
        // While loop
        $region33: #{head_forward.3} parent=31 // loop_pre_header
          _
        $region34: #{head_forward.3} parent=31 // loop_header
          %s228 = sphi 0, %s230
          %p229 = scmp.ge.s32.totalorder %s228, %s22
          %v233 = vphi -inf, %v296
          %v234 = vphi 0.0, %v307
          %v235 = vphi 0.0, %v357
        $region35: #{head_forward.3} parent=31 // loop_header_branch
          %232 = sbr.rel (%p229) target = $region39
        $region36: #{head_forward.3} parent=31 // loop_body
          %s236 = smul.u32 %s228, 8
          %s237 = sshra.s32 %s236, 3
          %s238 = sand.u32 %s236, 7
          %s239 = smul.addr %s237, 4
          %s240 = scalar_lea.vmem %s220, %s239
          %v241 = vld [vmem:[%s240] sm:$0xf]
          %s242 = smul.addr %s237, 4
          %s243 = scalar_lea.vmem %s224, %s242
          %v244 = vld [vmem:[%s243] sm:$0xf]
          %vm245 = vcmask 130048
          %v247 = vsel %vm245, %v226, 0
          %v250 = vsel %vm245, %v241, 0
          %252 = vmatprep.subr.bf16.mxu0 0
          %253 = vmatpush1.bf16.xpose.msra.mxu0 0
          %254 = vmatprep.subr.bf16.mxu0 0
          %255 = vmatpush1.bf16.xpose.msra.mxu0 0
          %256 = vmatprep.subr.bf16.mxu0 0
          %257 = vmatpush1.bf16.xpose.msra.mxu0 0
          %258 = vmatprep.subr.bf16.mxu0 0
          %259 = vmatpush1.bf16.xpose.msra.mxu0 0
          %260 = vmatprep.subr.bf16.mxu0 0
          %261 = vmatpush1.bf16.xpose.msra.mxu0 0
          %262 = vmatprep.subr.bf16.mxu0 0
          %263 = vmatpush1.bf16.xpose.msra.mxu0 0
          %264 = vmatprep.subr.bf16.mxu0 0
          %265 = vmatpush1.bf16.xpose.msra.mxu0 0
          %266 = vmatprep.subr.bf16.mxu0 0
          %267 = vmatpush1.bf16.xpose.msra.mxu0 %v250
          %268 = vmatprep.subr.bf16.mxu0 0
          %269 = vmatpush2.bf16.xpose.msra.mxu0 0
          %270 = vmatprep.subr.bf16.mxu0 0
          %271 = vmatpush2.bf16.xpose.msra.mxu0 0
          %272 = vmatprep.subr.bf16.mxu0 0
          %273 = vmatpush2.bf16.xpose.msra.mxu0 0
          %274 = vmatprep.subr.bf16.mxu0 0
          %275 = vmatpush2.bf16.xpose.msra.mxu0 0
          %276 = vmatprep.subr.bf16.mxu0 0
          %277 = vmatpush2.bf16.xpose.msra.mxu0 0
          %278 = vmatprep.subr.bf16.mxu0 0
          %279 = vmatpush2.bf16.xpose.msra.mxu0 0
          %280 = vmatprep.subr.bf16.mxu0 0
          %281 = vmatpush2.bf16.xpose.msra.mxu0 0
          %282 = vmatprep.subr.bf16.mxu0 0
          %283 = vmatpush2.bf16.xpose.msra.mxu0 0
          %284 = vmatprep.mubr.bf16.mxu0 0
          %285 = vmatmul.mubr.bf16.gmra.mxu0 %v247
          %v286 = vpop.f32.mrf.mxu0
          %v287 = vadd.f32 0.0, %v286
          %v288 = vpop.f32.mrf.mxu0
          %v289 = vpop.f32.mrf.mxu0
          %v290 = vpop.f32.mrf.mxu0
          %291 = vdwg.mxu0
          %vm292 = vcmask 64512
          %v293 = vsel %vm292, %v287, -inf
          %294 = vmax.xlane.f32.xlu0 %v293
          %v295 = vpop.xlane.xlu0 %294
          %v296 = vmax.f32 %v233, %v295
          %v297 = vsub.f32 %v233, %v296
          %v298 = vmul.f32 %v297, 1.442695
          %v299 = vpow.pop %v298
          %v300 = vsub.f32 %v287, %v296
          %v301 = vmul.f32 %v300, 1.442695
          %v302 = vpow.pop %v301
          %v303 = vmul.f32 %v299, %v234
          %v304 = vsel %vm292, %v302, 0.0
          %305 = vadd.xlane.f32.xlu0 %v304
          %v306 = vpop.xlane.xlu0 %305
          %v307 = vadd.f32 %v303, %v306
          %v308 = vmul.f32 %v299, %v235
          %v309 = vpack.c.bf16 %v302, %v302
          %v311 = vsel %vm292, %v309, 0
          %vm313 = vcmask 1043456
          %v315 = vsel %vm313, %v244, 0
          %317 = vmatprep.subr.bf16.mxu0 0
          %318 = vmatpush1.bf16.msra.mxu0 0
          %319 = vmatprep.subr.bf16.mxu0 0
          %320 = vmatpush1.bf16.msra.mxu0 0
          %321 = vmatprep.subr.bf16.mxu0 0
          %322 = vmatpush1.bf16.msra.mxu0 0
          %323 = vmatprep.subr.bf16.mxu0 0
          %324 = vmatpush1.bf16.msra.mxu0 0
          %325 = vmatprep.subr.bf16.mxu0 0
          %326 = vmatpush1.bf16.msra.mxu0 0
          %327 = vmatprep.subr.bf16.mxu0 0
          %328 = vmatpush1.bf16.msra.mxu0 0
          %329 = vmatprep.subr.bf16.mxu0 0
          %330 = vmatpush1.bf16.msra.mxu0 0
          %331 = vmatprep.subr.bf16.mxu0 0
          %332 = vmatpush1.bf16.msra.mxu0 %v315
          %333 = vmatprep.subr.bf16.mxu0 0
          %334 = vmatpush2.bf16.msra.mxu0 0
          %335 = vmatprep.subr.bf16.mxu0 0
          %336 = vmatpush2.bf16.msra.mxu0 0
          %337 = vmatprep.subr.bf16.mxu0 0
          %338 = vmatpush2.bf16.msra.mxu0 0
          %339 = vmatprep.subr.bf16.mxu0 0
          %340 = vmatpush2.bf16.msra.mxu0 0
          %341 = vmatprep.subr.bf16.mxu0 0
          %342 = vmatpush2.bf16.msra.mxu0 0
          %343 = vmatprep.subr.bf16.mxu0 0
          %344 = vmatpush2.bf16.msra.mxu0 0
          %345 = vmatprep.subr.bf16.mxu0 0
          %346 = vmatpush2.bf16.msra.mxu0 0
          %347 = vmatprep.subr.bf16.mxu0 0
          %348 = vmatpush2.bf16.msra.mxu0 0
          %349 = vmatprep.mubr.bf16.mxu0 0
          %350 = vmatmul.mubr.bf16.gmra.mxu0 %v311
          %v351 = vpop.f32.mrf.mxu0
          %v352 = vadd.f32 0.0, %v351
          %v353 = vpop.f32.mrf.mxu0
          %v354 = vpop.f32.mrf.mxu0
          %v355 = vpop.f32.mrf.mxu0
          %356 = vdwg.mxu0
          %v357 = vadd.f32 %v308, %v352
        $region37: #{head_forward.3} parent=31 // loop_footer
          %s230 = sadd.s32 %s228, 1
        $region38: #{head_forward.3} parent=31 // loop_footer_branch
          %227 = sbr.rel target = $region34
        $region39: #{head_forward.3} parent=31 // loop_exit
          _
        %s358 = smul.u32 %s22, 8
        %s359 = sshra.s32 %s358, 3
        %s360 = sand.u32 %s358, 7
        %s361 = smul.addr %s359, 4
        %s362 = scalar_lea.vmem %s220, %s361
        %v363 = vld [vmem:[%s362] sm:$0xf]
        %s364 = smul.addr %s359, 4
        %s365 = scalar_lea.vmem %s224, %s364
        %v366 = vld [vmem:[%s365] sm:$0xf]
        %vm367 = vcmask 130048
        %v369 = vsel %vm367, %v226, 0
        %v372 = vsel %vm367, %v363, 0
        %374 = vmatprep.subr.bf16.mxu0 0
        %375 = vmatpush1.bf16.xpose.msra.mxu0 0
        %376 = vmatprep.subr.bf16.mxu0 0
        %377 = vmatpush1.bf16.xpose.msra.mxu0 0
        %378 = vmatprep.subr.bf16.mxu0 0
        %379 = vmatpush1.bf16.xpose.msra.mxu0 0
        %380 = vmatprep.subr.bf16.mxu0 0
        %381 = vmatpush1.bf16.xpose.msra.mxu0 0
        %382 = vmatprep.subr.bf16.mxu0 0
        %383 = vmatpush1.bf16.xpose.msra.mxu0 0
        %384 = vmatprep.subr.bf16.mxu0 0
        %385 = vmatpush1.bf16.xpose.msra.mxu0 0
        %386 = vmatprep.subr.bf16.mxu0 0
        %387 = vmatpush1.bf16.xpose.msra.mxu0 0
        %388 = vmatprep.subr.bf16.mxu0 0
        %389 = vmatpush1.bf16.xpose.msra.mxu0 %v372
        %390 = vmatprep.subr.bf16.mxu0 0
        %391 = vmatpush2.bf16.xpose.msra.mxu0 0
        %392 = vmatprep.subr.bf16.mxu0 0
        %393 = vmatpush2.bf16.xpose.msra.mxu0 0
        %394 = vmatprep.subr.bf16.mxu0 0
        %395 = vmatpush2.bf16.xpose.msra.mxu0 0
        %396 = vmatprep.subr.bf16.mxu0 0
        %397 = vmatpush2.bf16.xpose.msra.mxu0 0
        %398 = vmatprep.subr.bf16.mxu0 0
        %399 = vmatpush2.bf16.xpose.msra.mxu0 0
        %400 = vmatprep.subr.bf16.mxu0 0
        %401 = vmatpush2.bf16.xpose.msra.mxu0 0
        %402 = vmatprep.subr.bf16.mxu0 0
        %403 = vmatpush2.bf16.xpose.msra.mxu0 0
        %404 = vmatprep.subr.bf16.mxu0 0
        %405 = vmatpush2.bf16.xpose.msra.mxu0 0
        %406 = vmatprep.mubr.bf16.mxu0 0
        %407 = vmatmul.mubr.bf16.gmra.mxu0 %v369
        %v408 = vpop.f32.mrf.mxu0
        %v409 = vadd.f32 0.0, %v408
        %v410 = vpop.f32.mrf.mxu0
        %v411 = vpop.f32.mrf.mxu0
        %v412 = vpop.f32.mrf.mxu0
        %413 = vdwg.mxu0
        %v414 = vlaneseq
        %v415 = vshrl.u32 %v414, 7
        %v416 = vlaneseq
        %v417 = vand.u32 %v416, 127
        %vm418 = vcmp.le.s32.totalorder %v417, %v415
        %v419 = vsel %vm418, %v409, -inf
        %vm420 = vcmask 64512
        %v421 = vsel %vm420, %v419, -inf
        %422 = vmax.xlane.f32.xlu0 %v421
        %v423 = vpop.xlane.xlu0 %422
        %v424 = vmax.f32 %v233, %v423
        %v425 = vsub.f32 %v233, %v424
        %v426 = vmul.f32 %v425, 1.442695
        %v427 = vpow.pop %v426
        %v428 = vsub.f32 %v419, %v424
        %v429 = vmul.f32 %v428, 1.442695
        %v430 = vpow.pop %v429
        %v431 = vmul.f32 %v427, %v234
        %v432 = vsel %vm420, %v430, 0.0
        %433 = vadd.xlane.f32.xlu0 %v432
        %v434 = vpop.xlane.xlu0 %433
        %v435 = vadd.f32 %v431, %v434
        %v436 = vmul.f32 %v427, %v235
        %v437 = vpack.c.bf16 %v430, %v430
        %v439 = vsel %vm420, %v437, 0
        %vm441 = vcmask 1043456
        %v443 = vsel %vm441, %v366, 0
        %445 = vmatprep.subr.bf16.mxu0 0
        %446 = vmatpush1.bf16.msra.mxu0 0
        %447 = vmatprep.subr.bf16.mxu0 0
        %448 = vmatpush1.bf16.msra.mxu0 0
        %449 = vmatprep.subr.bf16.mxu0 0
        %450 = vmatpush1.bf16.msra.mxu0 0
        %451 = vmatprep.subr.bf16.mxu0 0
        %452 = vmatpush1.bf16.msra.mxu0 0
        %453 = vmatprep.subr.bf16.mxu0 0
        %454 = vmatpush1.bf16.msra.mxu0 0
        %455 = vmatprep.subr.bf16.mxu0 0
        %456 = vmatpush1.bf16.msra.mxu0 0
        %457 = vmatprep.subr.bf16.mxu0 0
        %458 = vmatpush1.bf16.msra.mxu0 0
        %459 = vmatprep.subr.bf16.mxu0 0
        %460 = vmatpush1.bf16.msra.mxu0 %v443
        %461 = vmatprep.subr.bf16.mxu0 0
        %462 = vmatpush2.bf16.msra.mxu0 0
        %463 = vmatprep.subr.bf16.mxu0 0
        %464 = vmatpush2.bf16.msra.mxu0 0
        %465 = vmatprep.subr.bf16.mxu0 0
        %466 = vmatpush2.bf16.msra.mxu0 0
        %467 = vmatprep.subr.bf16.mxu0 0
        %468 = vmatpush2.bf16.msra.mxu0 0
        %469 = vmatprep.subr.bf16.mxu0 0
        %470 = vmatpush2.bf16.msra.mxu0 0
        %471 = vmatprep.subr.bf16.mxu0 0
        %472 = vmatpush2.bf16.msra.mxu0 0
        %473 = vmatprep.subr.bf16.mxu0 0
        %474 = vmatpush2.bf16.msra.mxu0 0
        %475 = vmatprep.subr.bf16.mxu0 0
        %476 = vmatpush2.bf16.msra.mxu0 0
        %477 = vmatprep.mubr.bf16.mxu0 0
        %478 = vmatmul.mubr.bf16.gmra.mxu0 %v439
        %v479 = vpop.f32.mrf.mxu0
        %v480 = vadd.f32 0.0, %v479
        %v481 = vpop.f32.mrf.mxu0
        %v482 = vpop.f32.mrf.mxu0
        %v483 = vpop.f32.mrf.mxu0
        %484 = vdwg.mxu0
        %v485 = vadd.f32 %v436, %v480
        %v486 = vrcp.pop %v435
        %v487 = vmul.f32 %v485, %v486
        %488 = vst.msk [vmem:[%s209] sm:$0xff] %vm367, %v487
        %s489 = sand.u32 %s119, 1
        %s490 = scalar_lea.sflag [#allocation3], %s489
        %s491 = sand.u32 %s119, 1
        %s492 = smul.addr %s491, 8
        %s493 = scalar_lea.vmem [#allocation2], %s492
        // Predicated region
        $region40: #{head_forward.3} parent=31 // pred_check
          %p494 = pneg %p129
        $region41: #{head_forward.3} parent=31 // pred_check_branch
          %496 = sbr.rel (%p494) target = $region43
        $region42: #{head_forward.3} parent=31 // pred_region
          %s498 = ssub.s32 128, 128
          %499 = vsyncadd %s490, %s498
          %s500 = sadd.s32 %s22, %s21
          %s501 = smul.addr %s500, 128
          %s502 = scalar_lea.hbm %s3, %s501
          %s504 = sshll.u32 %s493, 4
          %s505 = int_to_ptr.vmem [resolvable:$true] %s504
          %507 = dma.vmem_to_hbm [thread:$0]  %s505, 128, %s502, %s490
        $region43: #{head_forward.3} parent=31 // pred_fallthru
          _
      $region32: #{head_forward.3} parent=5 // pred_fallthru
        _
      %p508 = scmp.le.s32.totalorder 2, %s12
      // Predicated region
      $region44: #{head_forward.3} parent=5 // pred_check
        %p509 = pneg %p508
      $region45: #{head_forward.3} parent=5 // pred_check_branch
        %511 = sbr.rel (%p509) target = $region47
      $region46: #{head_forward.3} parent=5 // pred_region
        %s512 = ssub.s32 %s12, 2
        // Predicated region
        $region48: #{head_forward.3} parent=46 // pred_check
          %p513 = pneg %p135
        $region49: #{head_forward.3} parent=46 // pred_check_branch
          %515 = sbr.rel (%p513) target = $region51
        $region50: #{head_forward.3} parent=46 // pred_region
          %s516 = sand.u32 %s120, 1
          %s517 = scalar_lea.sflag [#allocation3], %s516
          %s518 = sand.u32 %s120, 1
          %s519 = smul.addr %s518, 8
          %s520 = scalar_lea.vmem [#allocation2], %s519
          %521 = dma.done %s517, 128
        $region51: #{head_forward.3} parent=46 // pred_fallthru
          _
      $region47: #{head_forward.3} parent=5 // pred_fallthru
        _
    $region6: #{head_forward.3} parent=1 // loop_footer
      %s16 = sadd.s32 1, %s12
    $region7: #{head_forward.3} parent=1 // loop_footer_branch
      %11 = sbr.rel target = $region3
    $region8: #{head_forward.3} parent=1 // loop_exit
      _
    %522 = vsyncpa [#allocation3], 1
    %s523 = scalar_lea.sflag [#allocation3], 1
    %524 = vsyncpa %s523, 1

// kernel: head_forward.2
$region0: #{head_forward.2}
  #allocation0 [shape = 'u32[]', space=smem, size = 0x4, offset = 0x4, fixed_abs, tag = 'smem constant byte address 0x4 - core index']
  #allocation1 [shape = 'u32[144,128]{1,0:T(1,128)}', space=vmem, size = 0x12000, scoped, tag = 'internal scratch']
  %s0 = inlined_call_operand.vmem [shape: bf16[2,8,32], index: 0, kind: input, shape index: {}]
  %s1 = inlined_call_operand.vmem [shape: bf16[32,48], index: 1, kind: input, shape index: {}]
  %s2 = inlined_call_operand.vmem [shape: bf16[2,8,16], index: 2, kind: output, shape index: {0}]
  %s3 = inlined_call_operand.vmem [shape: bf16[2,8,16], index: 3, kind: output, shape index: {1}]
  %s4 = inlined_call_operand.vmem [shape: bf16[2,8,16], index: 4, kind: output, shape index: {2}]
  %5 = xla_tuple %s2, %s3, %s4
  %s6 = sld [smem:[#allocation0]]
  $region57: #{head_forward.2} parent=0
    _
  %s8 = ssub.s32 1, %s6
  %s9 = scalar_select 0, %s8, %s6
  loop: start=0, step=1, limit=4
  $region2: #{head_forward.2} parent=0 // loop_pre_header
    _
  $region3: #{head_forward.2} parent=0 // loop_header
    %s11 = sphi 0, %s15
    %p12 = scmp.ge.s32.totalorder %s11, 4
    %s18 = sphi 0, %s30
    %s19 = sphi 0, %s26
    %s20 = sphi 0, %s18
    %s21 = sphi 0, %s19
    %s22 = sphi 0, %s20
    %s23 = sphi 0, %s21
    %s35 = sphi 0, %s37
    %s38 = sphi 0, %s35
    %s39 = sphi 0, %s38
    %s55 = sphi 0, %s39
    %s59 = sphi 0, %s59
    %s61 = sphi 0, %s59
    %s62 = sphi 0, %s61
    %s76 = sphi 0, %s62
    %s84 = sphi 0, %s86
    %s87 = sphi 0, %s84
    %s88 = sphi 0, %s87
    %s104 = sphi 0, %s88
    %s112 = sphi 0, %s114
    %s115 = sphi 0, %s112
    %s116 = sphi 0, %s115
    %s132 = sphi 0, %s116
    %s140 = sphi 0, %s142
    %s143 = sphi 0, %s140
    %s144 = sphi 0, %s143
    %s160 = sphi 0, %s144
  $region4: #{head_forward.2} parent=0 // loop_header_branch
    %14 = sbr.rel (%p12) target = $region8
  $region5: #{head_forward.2} parent=0 // loop_body
    %s16 = ssub.s32 %s11, 1
    %s17 = ssub.s32 %s11, 2
    %s24 = sadd.s32 1, %s19
    %p25 = scmp.ge.s32.totalorder %s24, 1
    %s26 = scalar_select %p25, 0, %s24
    %s27 = sadd.s32 1, %s18
    %s28 = scalar_select %p25, %s27, %s18
    %p29 = scmp.ge.s32.totalorder %s28, 2
    %s30 = scalar_select %p29, 0, %s28
    %s31 = ssub.s32 %s18, %s30
    %s32 = ssub.s32 %s19, %s26
    %s33 = sor.u32 %s31, %s32
    %p34 = scmp.eq.s32.totalorder %s33, 0
    %s36 = sadd.s32 %s35, 1
    %s37 = scalar_select %p34, %s35, %s36
    %p40 = pneg %p34
    %p41 = scmp.eq.s32.totalorder %s11, 1
    %p42 = por %p40, %p41
    %p43 = scmp.ne.s32.totalorder %s35, %s38
    %p44 = scmp.eq.s32.totalorder %s11, 0
    %p45 = por %p43, %p44
    %p46 = scmp.ne.s32.totalorder %s35, %s38
    %p47 = scmp.eq.s32.totalorder %s16, 1
    %p48 = por %p46, %p47
    %p49 = scmp.ne.s32.totalorder %s38, %s39
    %p50 = scmp.eq.s32.totalorder %s16, 0
    %p51 = por %p49, %p50
    %p52 = scmp.ne.s32.totalorder %s38, %s39
    %p53 = scmp.eq.s32.totalorder %s17, 1
    %p54 = por %p52, %p53
    %p56 = scmp.ne.s32.totalorder %s39, %s55
    %p57 = scmp.eq.s32.totalorder %s17, 0
    %p58 = por %p56, %p57
    %s60 = sadd.s32 %s59, 1
    %p63 = scmp.eq.s32.totalorder %s11, 1
    %p64 = scmp.ne.s32.totalorder %s59, %s61
    %p65 = scmp.eq.s32.totalorder %s11, 0
    %p66 = por %p64, %p65
    %p67 = scmp.ne.s32.totalorder %s59, %s61
    %p68 = scmp.eq.s32.totalorder %s16, 1
    %p69 = por %p67, %p68
    %p70 = scmp.ne.s32.totalorder %s61, %s62
    %p71 = scmp.eq.s32.totalorder %s16, 0
    %p72 = por %p70, %p71
    %p73 = scmp.ne.s32.totalorder %s61, %s62
    %p74 = scmp.eq.s32.totalorder %s17, 1
    %p75 = por %p73, %p74
    %p77 = scmp.ne.s32.totalorder %s62, %s76
    %p78 = scmp.eq.s32.totalorder %s17, 0
    %p79 = por %p77, %p78
    %s80 = ssub.s32 %s18, %s30
    %s81 = ssub.s32 %s19, %s26
    %s82 = sor.u32 %s80, %s81
    %p83 = scmp.eq.s32.totalorder %s82, 0
    %s85 = sadd.s32 %s84, 1
    %s86 = scalar_select %p83, %s84, %s85
    %p89 = pneg %p83
    %p90 = scmp.eq.s32.totalorder %s11, 1
    %p91 = por %p89, %p90
    %p92 = scmp.ne.s32.totalorder %s84, %s87
    %p93 = scmp.eq.s32.totalorder %s11, 0
    %p94 = por %p92, %p93
    %p95 = scmp.ne.s32.totalorder %s84, %s87
    %p96 = scmp.eq.s32.totalorder %s16, 1
    %p97 = por %p95, %p96
    %p98 = scmp.ne.s32.totalorder %s87, %s88
    %p99 = scmp.eq.s32.totalorder %s16, 0
    %p100 = por %p98, %p99
    %p101 = scmp.ne.s32.totalorder %s87, %s88
    %p102 = scmp.eq.s32.totalorder %s17, 1
    %p103 = por %p101, %p102
    %p105 = scmp.ne.s32.totalorder %s88, %s104
    %p106 = scmp.eq.s32.totalorder %s17, 0
    %p107 = por %p105, %p106
    %s108 = ssub.s32 %s18, %s30
    %s109 = ssub.s32 %s19, %s26
    %s110 = sor.u32 %s108, %s109
    %p111 = scmp.eq.s32.totalorder %s110, 0
    %s113 = sadd.s32 %s112, 1
    %s114 = scalar_select %p111, %s112, %s113
    %p117 = pneg %p111
    %p118 = scmp.eq.s32.totalorder %s11, 1
    %p119 = por %p117, %p118
    %p120 = scmp.ne.s32.totalorder %s112, %s115
    %p121 = scmp.eq.s32.totalorder %s11, 0
    %p122 = por %p120, %p121
    %p123 = scmp.ne.s32.totalorder %s112, %s115
    %p124 = scmp.eq.s32.totalorder %s16, 1
    %p125 = por %p123, %p124
    %p126 = scmp.ne.s32.totalorder %s115, %s116
    %p127 = scmp.eq.s32.totalorder %s16, 0
    %p128 = por %p126, %p127
    %p129 = scmp.ne.s32.totalorder %s115, %s116
    %p130 = scmp.eq.s32.totalorder %s17, 1
    %p131 = por %p129, %p130
    %p133 = scmp.ne.s32.totalorder %s116, %s132
    %p134 = scmp.eq.s32.totalorder %s17, 0
    %p135 = por %p133, %p134
    %s136 = ssub.s32 %s18, %s30
    %s137 = ssub.s32 %s19, %s26
    %s138 = sor.u32 %s136, %s137
    %p139 = scmp.eq.s32.totalorder %s138, 0
    %s141 = sadd.s32 %s140, 1
    %s142 = scalar_select %p139, %s140, %s141
    %p145 = pneg %p139
    %p146 = scmp.eq.s32.totalorder %s11, 1
    %p147 = por %p145, %p146
    %p148 = scmp.ne.s32.totalorder %s140, %s143
    %p149 = scmp.eq.s32.totalorder %s11, 0
    %p150 = por %p148, %p149
    %p151 = scmp.ne.s32.totalorder %s140, %s143
    %p152 = scmp.eq.s32.totalorder %s16, 1
    %p153 = por %p151, %p152
    %p154 = scmp.ne.s32.totalorder %s143, %s144
    %p155 = scmp.eq.s32.totalorder %s16, 0
    %p156 = por %p154, %p155
    %p157 = scmp.ne.s32.totalorder %s143, %s144
    %p158 = scmp.eq.s32.totalorder %s17, 1
    %p159 = por %p157, %p158
    %p161 = scmp.ne.s32.totalorder %s144, %s160
    %p162 = scmp.eq.s32.totalorder %s17, 0
    %p163 = por %p161, %p162
    %p164 = scmp.le.s32.totalorder 1, %s11
    %p165 = scmp.lt.s32.totalorder %s11, 3
    %p166 = pnand %p164, %p165
    %p167 = pneg %p166
    // Predicated region
    $region9: #{head_forward.2} parent=5 // pred_check
      _
    $region10: #{head_forward.2} parent=5 // pred_check_branch
      %169 = sbr.rel (%p166) target = $region12
    $region11: #{head_forward.2} parent=5 // pred_region
      %s170 = ssub.s32 %s11, 1
      // Predicated region
      $region13: #{head_forward.2} parent=11 // pred_check
        %p171 = pneg %p72
      $region14: #{head_forward.2} parent=11 // pred_check_branch
        %173 = sbr.rel (%p171) target = $region16
      $region15: #{head_forward.2} parent=11 // pred_region
        _
      $region16: #{head_forward.2} parent=11 // pred_fallthru
        _
    $region12: #{head_forward.2} parent=5 // pred_fallthru
      _
    %p174 = scmp.lt.s32.totalorder %s11, 2
    // Predicated region
    $region17: #{head_forward.2} parent=5 // pred_check
      %p175 = pneg %p174
    $region18: #{head_forward.2} parent=5 // pred_check_branch
      %177 = sbr.rel (%p175) target = $region20
    $region19: #{head_forward.2} parent=5 // pred_region
      // Predicated region
      $region21: #{head_forward.2} parent=19 // pred_check
        %p178 = pneg %p45
      $region22: #{head_forward.2} parent=19 // pred_check_branch
        %180 = sbr.rel (%p178) target = $region24
      $region23: #{head_forward.2} parent=19 // pred_region
        %p181 = scmp.lt.s32.totalorder %s18, 1
        %s182 = scalar_select %p181, %s18, 1
        %p183 = scmp.lt.s32.totalorder %s19, 0
        %s184 = scalar_select %p183, %s19, 0
        %s185 = sadd.s32 %s184, %s182
        %s186 = smul.addr %s185, 4
        %s187 = scalar_lea.vmem %s0, %s186
      $region24: #{head_forward.2} parent=19 // pred_fallthru
        _
    $region20: #{head_forward.2} parent=5 // pred_fallthru
      _
    %p188 = scmp.le.s32.totalorder 1, %s11
    %p189 = scmp.lt.s32.totalorder %s11, 3
    %p190 = pnand %p188, %p189
    %p191 = pneg %p190
    // Predicated region
    $region25: #{head_forward.2} parent=5 // pred_check
      _
    $region26: #{head_forward.2} parent=5 // pred_check_branch
      %193 = sbr.rel (%p190) target = $region28
    $region27: #{head_forward.2} parent=5 // pred_region
      %s194 = ssub.s32 %s11, 1
      %p195 = scmp.lt.s32.totalorder %s20, 1
      %s196 = scalar_select %p195, %s20, 1
      %p197 = scmp.lt.s32.totalorder %s21, 0
      %s198 = scalar_select %p197, %s21, 0
      %s199 = sadd.s32 %s198, %s196
      %s200 = smul.addr %s199, 4
      %s201 = scalar_lea.vmem %s0, %s200
      %p202 = pneg %p51
      %p203 = pneg %p48
      %p204 = pneg %p72
      %p205 = pneg %p69
      %p206 = pneg %p100
      %p207 = pneg %p97
      %p208 = scmp.lt.s32.totalorder %s20, 1
      %s209 = scalar_select %p208, %s20, 1
      %p210 = scmp.lt.s32.totalorder %s21, 0
      %s211 = scalar_select %p210, %s21, 0
      %s212 = sadd.s32 %s211, %s209
      %s213 = smul.addr %s212, 4
      %s214 = scalar_lea.vmem %s2, %s213
      %p215 = pneg %p128
      %p216 = pneg %p125
      %p217 = scmp.lt.s32.totalorder %s20, 1
      %s218 = scalar_select %p217, %s20, 1
      %p219 = scmp.lt.s32.totalorder %s21, 0
      %s220 = scalar_select %p219, %s21, 0
      %s221 = sadd.s32 %s220, %s218
      %s222 = smul.addr %s221, 4
      %s223 = scalar_lea.vmem %s3, %s222
      %p224 = pneg %p156
      %p225 = pneg %p153
      %p226 = scmp.lt.s32.totalorder %s20, 1
      %s227 = scalar_select %p226, %s20, 1
      %p228 = scmp.lt.s32.totalorder %s21, 0
      %s229 = scalar_select %p228, %s21, 0
      %s230 = sadd.s32 %s229, %s227
      %s231 = smul.addr %s230, 4
      %s232 = scalar_lea.vmem %s4, %s231
      %p233 = scmp.lt.s32.totalorder %s20, 1
      %s234 = scalar_select %p233, %s20, 1
      %p235 = scmp.lt.s32.totalorder %s21, 0
      %s236 = scalar_select %p235, %s21, 0
      %s237 = sadd.s32 %s236, %s234
      %s238 = smul.addr %s237, 4
      %s239 = scalar_lea.vmem %s0, %s238
      %p240 = scmp.lt.s32.totalorder %s20, 1
      %s241 = scalar_select %p240, %s20, 1
      %p242 = scmp.lt.s32.totalorder %s21, 0
      %s243 = scalar_select %p242, %s21, 0
      %s244 = sadd.s32 %s243, %s241
      %s245 = smul.addr %s244, 4
      %s246 = scalar_lea.vmem %s2, %s245
      %p247 = scmp.lt.s32.totalorder %s20, 1
      %s248 = scalar_select %p247, %s20, 1
      %p249 = scmp.lt.s32.totalorder %s21, 0
      %s250 = scalar_select %p249, %s21, 0
      %s251 = sadd.s32 %s250, %s248
      %s252 = smul.addr %s251, 4
      %s253 = scalar_lea.vmem %s3, %s252
      %p254 = scmp.lt.s32.totalorder %s20, 1
      %s255 = scalar_select %p254, %s20, 1
      %p256 = scmp.lt.s32.totalorder %s21, 0
      %s257 = scalar_select %p256, %s21, 0
      %s258 = sadd.s32 %s257, %s255
      %s259 = smul.addr %s258, 4
      %s260 = scalar_lea.vmem %s4, %s259
      %v262 = vld [vmem:[%s239] sm:$0xf]
      %v263 = vld [vmem:[%s1] sm:$0xf]
      %v264 = vld [vmem:[%s1 + $0x4] sm:$0xf]
      %v265 = vld [vmem:[%s1 + $0x8] sm:$0xf]
      %v266 = vld [vmem:[%s1 + $0xc] sm:$0xf]
      %v271 = vunpack.c.l.b16 %v263
      %v272 = vunpack.c.l.b16 %v264
      %v273 = vunpack.c.l.b16 %v265
      %v274 = vunpack.c.l.b16 %v266
      %v275 = vpack.c.b16 %v272, %v271
      %v276 = vpack.c.b16 %v274, %v273
      %vm279 = vcmask 261120
      %v281 = vsel %vm279, %v262, 0
      %283 = vmatprep.subr.bf16.mxu0 0
      %284 = vmatpush1.bf16.msra.mxu0 0
      %285 = vmatprep.subr.bf16.mxu0 0
      %286 = vmatpush1.bf16.msra.mxu0 0
      %287 = vmatprep.subr.bf16.mxu0 0
      %288 = vmatpush1.bf16.msra.mxu0 0
      %289 = vmatprep.subr.bf16.mxu0 0
      %290 = vmatpush1.bf16.msra.mxu0 0
      %291 = vmatprep.subr.bf16.mxu0 0
      %292 = vmatpush1.bf16.msra.mxu0 0
      %293 = vmatprep.subr.bf16.mxu0 0
      %294 = vmatpush1.bf16.msra.mxu0 0
      %295 = vmatprep.subr.bf16.mxu0 0
      %296 = vmatpush1.bf16.msra.mxu0 %v276
      %297 = vmatprep.subr.bf16.mxu0 0
      %298 = vmatpush1.bf16.msra.mxu0 %v275
      %299 = vmatprep.subr.bf16.mxu0 0
      %300 = vmatpush2.bf16.msra.mxu0 0
      %301 = vmatprep.subr.bf16.mxu0 0
      %302 = vmatpush2.bf16.msra.mxu0 0
      %303 = vmatprep.subr.bf16.mxu0 0
      %304 = vmatpush2.bf16.msra.mxu0 0
      %305 = vmatprep.subr.bf16.mxu0 0
      %306 = vmatpush2.bf16.msra.mxu0 0
      %307 = vmatprep.subr.bf16.mxu0 0
      %308 = vmatpush2.bf16.msra.mxu0 0
      %309 = vmatprep.subr.bf16.mxu0 0
      %310 = vmatpush2.bf16.msra.mxu0 0
      %311 = vmatprep.subr.bf16.mxu0 0
      %312 = vmatpush2.bf16.msra.mxu0 0
      %313 = vmatprep.subr.bf16.mxu0 0
      %314 = vmatpush2.bf16.msra.mxu0 0
      %315 = vmatprep.mubr.bf16.mxu0 0
      %316 = vmatmul.mubr.bf16.gmra.mxu0 %v281
      %v317 = vpop.f32.mrf.mxu0
      %v318 = vadd.f32 0.0, %v317
      %v319 = vpop.f32.mrf.mxu0
      %v320 = vpop.f32.mrf.mxu0
      %v321 = vpop.f32.mrf.mxu0
      %322 = vdwg.mxu0
      %v323 = vmul.f32 %v318, 0.17677669
      %v324 = vpack.c.bf16 %v323, %v323
      %vm325 = vcmask 125952
      %326 = vst.msk [vmem:[%s246] sm:$0xf] %vm325, %v324
      %v327 = vpack.c.bf16 %v318, %v318
      %v329 = vunpack.c.l.b16 %v327
      %v330 = vpack.c.b16 %v329, %v329
      %331 = vrot.lane.b32.xlu0 %v330, 112
      %v332 = vpop.permute.xlu0 %331
      %334 = vst.msk [vmem:[%s253] sm:$0xf] %vm325, %v332
      %335 = vrot.lane.b32.xlu0 %v330, 96
      %v336 = vpop.permute.xlu0 %335
      %338 = vst.msk [vmem:[%s260] sm:$0xf] %vm325, %v336
      %p339 = scmp.lt.s32.totalorder %s20, 1
      %s340 = scalar_select %p339, %s20, 1
      %p341 = scmp.lt.s32.totalorder %s21, 0
      %s342 = scalar_select %p341, %s21, 0
      %s343 = sadd.s32 %s342, %s340
      %s344 = smul.addr %s343, 4
      %s345 = scalar_lea.vmem %s2, %s344
      %p346 = scmp.lt.s32.totalorder %s20, 1
      %s347 = scalar_select %p346, %s20, 1
      %p348 = scmp.lt.s32.totalorder %s21, 0
      %s349 = scalar_select %p348, %s21, 0
      %s350 = sadd.s32 %s349, %s347
      %s351 = smul.addr %s350, 4
      %s352 = scalar_lea.vmem %s3, %s351
      %p353 = scmp.lt.s32.totalorder %s20, 1
      %s354 = scalar_select %p353, %s20, 1
      %p355 = scmp.lt.s32.totalorder %s21, 0
      %s356 = scalar_select %p355, %s21, 0
      %s357 = sadd.s32 %s356, %s354
      %s358 = smul.addr %s357, 4
      %s359 = scalar_lea.vmem %s4, %s358
      // Predicated region
      $region29: #{head_forward.2} parent=27 // pred_check
        %p360 = pneg %p97
      $region30: #{head_forward.2} parent=27 // pred_check_branch
        %362 = sbr.rel (%p360) target = $region32
      $region31: #{head_forward.2} parent=27 // pred_region
        _
      $region32: #{head_forward.2} parent=27 // pred_fallthru
        _
      // Predicated region
      $region33: #{head_forward.2} parent=27 // pred_check
        %p363 = pneg %p125
      $region34: #{head_forward.2} parent=27 // pred_check_branch
        %365 = sbr.rel (%p363) target = $region36
      $region35: #{head_forward.2} parent=27 // pred_region
        _
      $region36: #{head_forward.2} parent=27 // pred_fallthru
        _
      // Predicated region
      $region37: #{head_forward.2} parent=27 // pred_check
        %p366 = pneg %p153
      $region38: #{head_forward.2} parent=27 // pred_check_branch
        %368 = sbr.rel (%p366) target = $region40
      $region39: #{head_forward.2} parent=27 // pred_region
        _
      $region40: #{head_forward.2} parent=27 // pred_fallthru
        _
    $region28: #{head_forward.2} parent=5 // pred_fallthru
      _
    %p369 = scmp.le.s32.totalorder 2, %s11
    // Predicated region
    $region41: #{head_forward.2} parent=5 // pred_check
      %p370 = pneg %p369
    $region42: #{head_forward.2} parent=5 // pred_check_branch
      %372 = sbr.rel (%p370) target = $region44
    $region43: #{head_forward.2} parent=5 // pred_region
      %s373 = ssub.s32 %s11, 2
      // Predicated region
      $region45: #{head_forward.2} parent=43 // pred_check
        %p374 = pneg %p103
      $region46: #{head_forward.2} parent=43 // pred_check_branch
        %376 = sbr.rel (%p374) target = $region48
      $region47: #{head_forward.2} parent=43 // pred_region
        %p377 = scmp.lt.s32.totalorder %s22, 1
        %s378 = scalar_select %p377, %s22, 1
        %p379 = scmp.lt.s32.totalorder %s23, 0
        %s380 = scalar_select %p379, %s23, 0
        %s381 = sadd.s32 %s380, %s378
        %s382 = smul.addr %s381, 4
        %s383 = scalar_lea.vmem %s2, %s382
      $region48: #{head_forward.2} parent=43 // pred_fallthru
        _
      // Predicated region
      $region49: #{head_forward.2} parent=43 // pred_check
        %p384 = pneg %p131
      $region50: #{head_forward.2} parent=43 // pred_check_branch
        %386 = sbr.rel (%p384) target = $region52
      $region51: #{head_forward.2} parent=43 // pred_region
        %p387 = scmp.lt.s32.totalorder %s22, 1
        %s388 = scalar_select %p387, %s22, 1
        %p389 = scmp.lt.s32.totalorder %s23, 0
        %s390 = scalar_select %p389, %s23, 0
        %s391 = sadd.s32 %s390, %s388
        %s392 = smul.addr %s391, 4
        %s393 = scalar_lea.vmem %s3, %s392
      $region52: #{head_forward.2} parent=43 // pred_fallthru
        _
      // Predicated region
      $region53: #{head_forward.2} parent=43 // pred_check
        %p394 = pneg %p159
      $region54: #{head_forward.2} parent=43 // pred_check_branch
        %396 = sbr.rel (%p394) target = $region56
      $region55: #{head_forward.2} parent=43 // pred_region
        %p397 = scmp.lt.s32.totalorder %s22, 1
        %s398 = scalar_select %p397, %s22, 1
        %p399 = scmp.lt.s32.totalorder %s23, 0
        %s400 = scalar_select %p399, %s23, 0
        %s401 = sadd.s32 %s400, %s398
        %s402 = smul.addr %s401, 4
        %s403 = scalar_lea.vmem %s4, %s402
      $region56: #{head_forward.2} parent=43 // pred_fallthru
        _
    $region44: #{head_forward.2} parent=5 // pred_fallthru
      _
  $region6: #{head_forward.2} parent=0 // loop_footer
    %s15 = sadd.s32 1, %s11
  $region7: #{head_forward.2} parent=0 // loop_footer_branch
    %10 = sbr.rel target = $region3
  $region8: #{head_forward.2} parent=0 // loop_exit
    _

</llo_original>
